<compile_context>
chip_gen: v5e
topology: v5e:2x2
jax: 0.10.0
libtpu: 0.0.40
codegen_flags: <defaults>
</compile_context>

<pallas_src>
import jax
import jax.numpy as jnp
from jax.experimental import pallas as pl
from jax.experimental.pallas import tpu as pltpu

EPS = 1e-5
LANE = 128


def _round_up(n: int, m: int) -> int:
    return (n + m - 1) // m * m


def global_embedding_kernel(x_ref, w1_ref, p1_ref, w2_ref, b2_ref, out_ref):
    # p1_ref rows: [0] = bias1, [1] = gamma1 (BN1 weight), [2] = beta1 (BN1 bias)
    inv_b = 1.0 / x_ref.shape[0]

    x = x_ref[...]                      # native dtype (f32 or bf16); MXU accumulates f32
    b1 = p1_ref[0:1, :]
    g1 = p1_ref[1:2, :]
    be1 = p1_ref[2:3, :]

    # --- Linear 1: (B, Din_p) @ (Din_p, H_p) + b1 ---
    h = jnp.dot(x, w1_ref[...], preferred_element_type=jnp.float32) + b1

    # --- BatchNorm1d(H), affine, training-mode batch stats (fused sum/sumsq) ---
    m1 = jnp.sum(h, axis=0, keepdims=True) * inv_b
    e2_1 = jnp.sum(h * h, axis=0, keepdims=True) * inv_b
    var1 = jnp.maximum(e2_1 - m1 * m1, 0.0)          # biased variance, clamp fp noise
    h = (h - m1) * jax.lax.rsqrt(var1 + EPS) * g1 + be1

    # --- ReLU ---
    h = jnp.maximum(h, 0.0)

    # --- Linear 2: (B, H_p) @ (H_p, Dout_p) + b2 ---
    y = jnp.dot(h, w2_ref[...], preferred_element_type=jnp.float32) + b2_ref[...]

    # --- BatchNorm1d(D_out), affine=False, training-mode batch stats ---
    m2 = jnp.sum(y, axis=0, keepdims=True) * inv_b
    e2_2 = jnp.sum(y * y, axis=0, keepdims=True) * inv_b
    var2 = jnp.maximum(e2_2 - m2 * m2, 0.0)
    out_ref[...] = ((y - m2) * jax.lax.rsqrt(var2 + EPS)).astype(out_ref.dtype)


def global_embedding(x, w1, b1, g1, be1, w2, b2):
    """x: (B, D_in) -> (B, D_out).

    Weights are pre-transposed (D_in, H), (H, D_out).  Feature dims are
    zero-padded to multiples of 128 so all kernel tiles are lane-dense; the
    padding is sliced off on return.
    """
    B, d_in = x.shape
    hid = w1.shape[1]
    d_out = w2.shape[1]

    d_in_p = _round_up(d_in, LANE)
    hid_p = _round_up(hid, LANE)
    d_out_p = _round_up(d_out, LANE)

    # Lane-pad operands (zeros) -- keeps the kernel's last dims >= 128.
    x_p = jnp.pad(x, ((0, 0), (0, d_in_p - d_in)))
    w1_p = jnp.zeros((d_in_p, hid_p), jnp.float32).at[:d_in, :hid].set(
        w1.astype(jnp.float32))
    w2_p = jnp.zeros((hid_p, d_out_p), jnp.float32).at[:hid, :d_out].set(
        w2.astype(jnp.float32))
    # Pack the three (1, H) parameters into a single lane-padded tensor.
    p1 = jnp.zeros((3, hid_p), jnp.float32)
    p1 = (p1.at[0, :hid].set(b1.reshape(-1).astype(jnp.float32))
             .at[1, :hid].set(g1.reshape(-1).astype(jnp.float32))
             .at[2, :hid].set(be1.reshape(-1).astype(jnp.float32)))
    b2_p = jnp.zeros((1, d_out_p), jnp.float32).at[0, :d_out].set(
        b2.reshape(-1).astype(jnp.float32))

    full = lambda a: pl.BlockSpec(a.shape, lambda: (0,) * a.ndim,
                                  memory_space=pltpu.MemorySpace.VMEM)

    out_p = pl.pallas_call(
        global_embedding_kernel,
        out_shape=jax.ShapeDtypeStruct((B, d_out_p), jnp.float32),
        in_specs=[full(x_p), full(w1_p), full(p1), full(w2_p), full(b2_p)],
        out_specs=pl.BlockSpec((B, d_out_p), lambda: (0, 0),
                               memory_space=pltpu.MemorySpace.VMEM),
        compiler_params=pltpu.CompilerParams(vmem_limit_bytes=64 * 1024 * 1024),
    )(x_p, w1_p, p1, w2_p, b2_p)

    return out_p[:, :d_out]


def _reference(x, w1, b1, g1, be1, w2, b2):
    x = x.astype(jnp.float32)
    h = x @ w1 + b1
    m = h.mean(0, keepdims=True)
    v = ((h - m) ** 2).mean(0, keepdims=True)
    h = (h - m) / jnp.sqrt(v + EPS) * g1 + be1
    h = jnp.maximum(h, 0.0)
    y = h @ w2 + b2
    m2 = y.mean(0, keepdims=True)
    v2 = ((y - m2) ** 2).mean(0, keepdims=True)
    return (y - m2) / jnp.sqrt(v2 + EPS)


if __name__ == "__main__":
    # Small shapes consistent with the module (input_dim -> hidden_dim -> output_dim),
    # deliberately NOT multiples of 128 so the lane-padding path is exercised.
    # Batch is 128 so each dot presents a full-M tile to the MXU.
    B, D_IN, HID, D_OUT = 128, 96, 160, 80

    key = jax.random.PRNGKey(0)
    kx, kw1, kb1, kw2, kb2, kg1, kbe1 = jax.random.split(key, 7)

    x = jax.random.normal(kx, (B, D_IN), dtype=jnp.float32)

    # PyTorch Linear weight is (out, in); we store the transposed (in, out) layout.
    w1 = jax.random.normal(kw1, (D_IN, HID), dtype=jnp.float32) * 0.05
    b1 = jax.random.normal(kb1, (1, HID), dtype=jnp.float32) * 0.05
    g1 = 1.0 + 0.1 * jax.random.normal(kg1, (1, HID), dtype=jnp.float32)   # BN1 weight
    be1 = 0.1 * jax.random.normal(kbe1, (1, HID), dtype=jnp.float32)       # BN1 bias
    w2 = jax.random.normal(kw2, (HID, D_OUT), dtype=jnp.float32) * 0.05
    b2 = jax.random.normal(kb2, (1, D_OUT), dtype=jnp.float32) * 0.05

    out = global_embedding(x, w1, b1, g1, be1, w2, b2)
    out = jax.block_until_ready(out)

    ref = _reference(x, w1, b1, g1, be1, w2, b2)
    assert out.shape == (B, D_OUT)
    assert jnp.allclose(out, ref, atol=1e-3, rtol=1e-3), (
        float(jnp.max(jnp.abs(out - ref))))

    print("KERNEL_OK")
</pallas_src>

<mosaic_0001>
module attributes {stable_mosaic.version = 11 : i64} {
  func.func @global_embedding_kernel(%arg0: memref<128x128xf32, #tpu.memory_space<vmem>>, %arg1: memref<128x256xf32, #tpu.memory_space<vmem>>, %arg2: memref<3x256xf32, #tpu.memory_space<vmem>>, %arg3: memref<256x128xf32, #tpu.memory_space<vmem>>, %arg4: memref<1x128xf32, #tpu.memory_space<vmem>>, %arg5: memref<128x128xf32, #tpu.memory_space<vmem>>) attributes {dimension_semantics = [], scalar_prefetch = 0 : i64, scratch_operands = 0 : i64, tpu.core_type = #tpu.core_type<tc>} {
    %c0 = arith.constant 0 : index
    %c0_0 = arith.constant 0 : index
    %0 = vector.load %arg0[%c0, %c0_0] : memref<128x128xf32, #tpu.memory_space<vmem>>, vector<128x128xf32>
    %c0_1 = arith.constant 0 : index
    %c0_2 = arith.constant 0 : index
    %1 = vector.load %arg2[%c0_1, %c0_2] : memref<3x256xf32, #tpu.memory_space<vmem>>, vector<1x256xf32>
    %c1 = arith.constant 1 : index
    %c0_3 = arith.constant 0 : index
    %2 = vector.load %arg2[%c1, %c0_3] : memref<3x256xf32, #tpu.memory_space<vmem>>, vector<1x256xf32>
    %c2 = arith.constant 2 : index
    %c0_4 = arith.constant 0 : index
    %3 = vector.load %arg2[%c2, %c0_4] : memref<3x256xf32, #tpu.memory_space<vmem>>, vector<1x256xf32>
    %c0_5 = arith.constant 0 : index
    %c0_6 = arith.constant 0 : index
    %4 = vector.load %arg1[%c0_5, %c0_6] : memref<128x256xf32, #tpu.memory_space<vmem>>, vector<128x256xf32>
    %cst = arith.constant dense<0.000000e+00> : vector<128x256xf32>
    %5 = tpu.matmul %0, %4, %cst {dimension_numbers = #tpu.dot_dimension_numbers<[1], [0], [0], [1], [0, 0, 1, 1], [], []>} : vector<128x128xf32>, vector<128x256xf32>, vector<128x256xf32> -> vector<128x256xf32>
    %6 = vector.broadcast %1 : vector<1x256xf32> to vector<128x256xf32>
    %7 = arith.addf %5, %6 : vector<128x256xf32>
    %cst_7 = arith.constant dense<0.000000e+00> : vector<256xf32>
    %8 = vector.multi_reduction <add>, %7, %cst_7 [0] : vector<128x256xf32> to vector<256xf32>
    %9 = vector.shape_cast %8 : vector<256xf32> to vector<1x256xf32>
    %cst_8 = arith.constant 7.812500e-03 : f32
    %10 = vector.broadcast %cst_8 : f32 to vector<1x256xf32>
    %11 = arith.mulf %9, %10 : vector<1x256xf32>
    %12 = arith.mulf %7, %7 : vector<128x256xf32>
    %cst_9 = arith.constant dense<0.000000e+00> : vector<256xf32>
    %13 = vector.multi_reduction <add>, %12, %cst_9 [0] : vector<128x256xf32> to vector<256xf32>
    %14 = vector.shape_cast %13 : vector<256xf32> to vector<1x256xf32>
    %cst_10 = arith.constant 7.812500e-03 : f32
    %15 = vector.broadcast %cst_10 : f32 to vector<1x256xf32>
    %16 = arith.mulf %14, %15 : vector<1x256xf32>
    %17 = arith.mulf %11, %11 : vector<1x256xf32>
    %18 = arith.subf %16, %17 : vector<1x256xf32>
    %cst_11 = arith.constant 0.000000e+00 : f32
    %19 = vector.broadcast %cst_11 : f32 to vector<1x256xf32>
    %20 = arith.maximumf %18, %19 : vector<1x256xf32>
    %21 = vector.broadcast %11 : vector<1x256xf32> to vector<128x256xf32>
    %22 = arith.subf %7, %21 : vector<128x256xf32>
    %cst_12 = arith.constant 9.99999974E-6 : f32
    %23 = vector.broadcast %cst_12 : f32 to vector<1x256xf32>
    %24 = arith.addf %20, %23 : vector<1x256xf32>
    %25 = math.rsqrt %24 : vector<1x256xf32>
    %26 = vector.broadcast %25 : vector<1x256xf32> to vector<128x256xf32>
    %27 = arith.mulf %22, %26 : vector<128x256xf32>
    %28 = vector.broadcast %2 : vector<1x256xf32> to vector<128x256xf32>
    %29 = arith.mulf %27, %28 : vector<128x256xf32>
    %30 = vector.broadcast %3 : vector<1x256xf32> to vector<128x256xf32>
    %31 = arith.addf %29, %30 : vector<128x256xf32>
    %cst_13 = arith.constant 0.000000e+00 : f32
    %32 = vector.broadcast %cst_13 : f32 to vector<128x256xf32>
    %33 = arith.maximumf %31, %32 : vector<128x256xf32>
    %c0_14 = arith.constant 0 : index
    %c0_15 = arith.constant 0 : index
    %34 = vector.load %arg3[%c0_14, %c0_15] : memref<256x128xf32, #tpu.memory_space<vmem>>, vector<256x128xf32>
    %cst_16 = arith.constant dense<0.000000e+00> : vector<128x128xf32>
    %35 = tpu.matmul %33, %34, %cst_16 {dimension_numbers = #tpu.dot_dimension_numbers<[1], [0], [0], [1], [0, 0, 1, 1], [], []>} : vector<128x256xf32>, vector<256x128xf32>, vector<128x128xf32> -> vector<128x128xf32>
    %c0_17 = arith.constant 0 : index
    %c0_18 = arith.constant 0 : index
    %36 = vector.load %arg4[%c0_17, %c0_18] : memref<1x128xf32, #tpu.memory_space<vmem>>, vector<1x128xf32>
    %37 = vector.broadcast %36 : vector<1x128xf32> to vector<128x128xf32>
    %38 = arith.addf %35, %37 : vector<128x128xf32>
    %cst_19 = arith.constant dense<0.000000e+00> : vector<128xf32>
    %39 = vector.multi_reduction <add>, %38, %cst_19 [0] : vector<128x128xf32> to vector<128xf32>
    %40 = vector.shape_cast %39 : vector<128xf32> to vector<1x128xf32>
    %cst_20 = arith.constant 7.812500e-03 : f32
    %41 = vector.broadcast %cst_20 : f32 to vector<1x128xf32>
    %42 = arith.mulf %40, %41 : vector<1x128xf32>
    %43 = arith.mulf %38, %38 : vector<128x128xf32>
    %cst_21 = arith.constant dense<0.000000e+00> : vector<128xf32>
    %44 = vector.multi_reduction <add>, %43, %cst_21 [0] : vector<128x128xf32> to vector<128xf32>
    %45 = vector.shape_cast %44 : vector<128xf32> to vector<1x128xf32>
    %cst_22 = arith.constant 7.812500e-03 : f32
    %46 = vector.broadcast %cst_22 : f32 to vector<1x128xf32>
    %47 = arith.mulf %45, %46 : vector<1x128xf32>
    %48 = arith.mulf %42, %42 : vector<1x128xf32>
    %49 = arith.subf %47, %48 : vector<1x128xf32>
    %cst_23 = arith.constant 0.000000e+00 : f32
    %50 = vector.broadcast %cst_23 : f32 to vector<1x128xf32>
    %51 = arith.maximumf %49, %50 : vector<1x128xf32>
    %52 = vector.broadcast %42 : vector<1x128xf32> to vector<128x128xf32>
    %53 = arith.subf %38, %52 : vector<128x128xf32>
    %cst_24 = arith.constant 9.99999974E-6 : f32
    %54 = vector.broadcast %cst_24 : f32 to vector<1x128xf32>
    %55 = arith.addf %51, %54 : vector<1x128xf32>
    %56 = math.rsqrt %55 : vector<1x128xf32>
    %57 = vector.broadcast %56 : vector<1x128xf32> to vector<128x128xf32>
    %58 = arith.mulf %53, %57 : vector<128x128xf32>
    %c0_25 = arith.constant 0 : index
    %c0_26 = arith.constant 0 : index
    %59 = vector.load %arg5[%c0_25, %c0_26] : memref<128x128xf32, #tpu.memory_space<vmem>>, vector<128x128xf32>
    tpu.vector_store %arg5[%c0_25, %c0_26], %58 {strides = array<i32>} : memref<128x128xf32, #tpu.memory_space<vmem>>, vector<128x128xf32>,
    return
  }
}

</mosaic_0001>

<llo_original>
// kernel: tpu_custom_call.1
$region0: #{tpu_custom_call.1}
  #allocation0 [shape = 'u32[]', space=smem, size = 0x4, offset = 0x4, fixed_abs, tag = 'smem constant byte address 0x4 - core index']
  #allocation1 [shape = 'u32[72,128]{1,0:T(1,128)}', space=vmem, size = 0x9000, scoped, tag = 'internal scratch']
  %s0 = inlined_call_operand.hbm [shape: f32[128,128], index: 0, kind: input, shape index: {}]
  %s1 = inlined_call_operand.hbm [shape: f32[128,256], index: 1, kind: input, shape index: {}]
  %s2 = inlined_call_operand.hbm [shape: f32[3,256], index: 2, kind: input, shape index: {}]
  %s3 = inlined_call_operand.hbm [shape: f32[256,128], index: 3, kind: input, shape index: {}]
  %s4 = inlined_call_operand.vmem [shape: f32[1,128], index: 4, kind: input, shape index: {}]
  %s5 = inlined_call_operand.hbm [shape: f32[128,128], index: 5, kind: output, shape index: {}]
  %s6 = sld [smem:[#allocation0]]
  $region46: #{tpu_custom_call.1} parent=0
    _
  %s8 = ssub.s32 1, %s6
  %s9 = scalar_select 0, %s8, %s6
  $region1: #{tpu_custom_call.1} parent=0
    #allocation2 [shape = 'u8[65536]{0}', space=vmem, size = 0x10000, scoped, tag = 'input window, operand 0, single buffered']
    #allocation3 [shape = 's32[1]{0}', space=sflag, size = 0x4, scoped, tag = 'scoped memory for tpu_custom_call.1']
    #allocation4 [shape = 's32[1]{0}', space=sflag, size = 0x4, scoped, tag = 'scoped memory for tpu_custom_call.1']
    #allocation5 [shape = 'u8[131072]{0}', space=vmem, size = 0x20000, scoped, tag = 'input window, operand 1, single buffered']
    #allocation6 [shape = 's32[1]{0}', space=sflag, size = 0x4, scoped, tag = 'scoped memory for tpu_custom_call.1']
    #allocation7 [shape = 'u8[4096]{0}', space=vmem, size = 0x1000, scoped, tag = 'input window, operand 2, single buffered']
    #allocation8 [shape = 'u8[131072]{0}', space=vmem, size = 0x20000, scoped, tag = 'input window, operand 3, single buffered']
    #allocation9 [shape = 's32[1]{0}', space=sflag, size = 0x4, scoped, tag = 'scoped memory for tpu_custom_call.1']
    #allocation10 [shape = 'u8[65536]{0}', space=vmem, size = 0x10000, scoped, tag = 'output window, operand 0, single buffered']
    %10 = vsyncpa [#allocation3], 0
    %11 = vsyncpa [#allocation6], 0
    %12 = vsyncpa [#allocation9], 0
    %13 = vsyncpa [#allocation4], 0
    // Predicated region
    $region2: #{tpu_custom_call.1} parent=1 // pred_check
      _
    $region3: #{tpu_custom_call.1} parent=1 // pred_check_branch
      %15 = sbr.rel (0) target = $region5
    $region4: #{tpu_custom_call.1} parent=1 // pred_region
      %17 = vsyncadd [#allocation3], 0
      %s18 = sshll.u32 %s0, 4
      %s19 = int_to_ptr.hbm [resolvable:$true] %s18
      %s20 = sshll.u32 [#allocation2], 4
      %s21 = int_to_ptr.vmem [resolvable:$true] %s20
      %26 = dma.hbm_to_vmem [thread:$0]  %s19, 2048, %s21, [#allocation3], 128, 128, 8
    $region5: #{tpu_custom_call.1} parent=1 // pred_fallthru
      _
    // Predicated region
    $region6: #{tpu_custom_call.1} parent=1 // pred_check
      _
    $region7: #{tpu_custom_call.1} parent=1 // pred_check_branch
      %28 = sbr.rel (0) target = $region9
    $region8: #{tpu_custom_call.1} parent=1 // pred_region
      %30 = vsyncadd [#allocation6], 0
      %s31 = sshll.u32 %s1, 4
      %s32 = int_to_ptr.hbm [resolvable:$true] %s31
      %s33 = sshll.u32 [#allocation5], 4
      %s34 = int_to_ptr.vmem [resolvable:$true] %s33
      %39 = dma.hbm_to_vmem [thread:$0]  %s32, 4096, %s34, [#allocation6], 256, 256, 16
    $region9: #{tpu_custom_call.1} parent=1 // pred_fallthru
      _
    // Predicated region
    $region10: #{tpu_custom_call.1} parent=1 // pred_check
      _
    $region11: #{tpu_custom_call.1} parent=1 // pred_check_branch
      %41 = sbr.rel (0) target = $region13
    $region12: #{tpu_custom_call.1} parent=1 // pred_region
      %43 = vsyncadd [#allocation6], 0
      %s45 = sshll.u32 %s2, 4
      %s46 = int_to_ptr.hbm [resolvable:$true] %s45
      %s47 = sshll.u32 [#allocation7], 4
      %s48 = int_to_ptr.vmem [resolvable:$true] %s47
      %50 = dma.hbm_to_vmem [thread:$0]  %s46, 128, %s48, [#allocation6]
    $region13: #{tpu_custom_call.1} parent=1 // pred_fallthru
      _
    // Predicated region
    $region14: #{tpu_custom_call.1} parent=1 // pred_check
      _
    $region15: #{tpu_custom_call.1} parent=1 // pred_check_branch
      %52 = sbr.rel (0) target = $region17
    $region16: #{tpu_custom_call.1} parent=1 // pred_region
      %54 = vsyncadd [#allocation9], 0
      %s55 = sshll.u32 %s3, 4
      %s56 = int_to_ptr.hbm [resolvable:$true] %s55
      %s57 = sshll.u32 [#allocation8], 4
      %s58 = int_to_ptr.vmem [resolvable:$true] %s57
      %63 = dma.hbm_to_vmem [thread:$0]  %s56, 4096, %s58, [#allocation9], 128, 128, 8
    $region17: #{tpu_custom_call.1} parent=1 // pred_fallthru
      _
    // Predicated region
    $region18: #{tpu_custom_call.1} parent=1 // pred_check
      _
    $region19: #{tpu_custom_call.1} parent=1 // pred_check_branch
      %65 = sbr.rel (0) target = $region21
    $region20: #{tpu_custom_call.1} parent=1 // pred_region
      _
    $region21: #{tpu_custom_call.1} parent=1 // pred_fallthru
      _
    // Predicated region
    $region22: #{tpu_custom_call.1} parent=1 // pred_check
      _
    $region23: #{tpu_custom_call.1} parent=1 // pred_check_branch
      %67 = sbr.rel (0) target = $region25
    $region24: #{tpu_custom_call.1} parent=1 // pred_region
      %69 = dma.done [#allocation3], 2048
    $region25: #{tpu_custom_call.1} parent=1 // pred_fallthru
      _
    // Predicated region
    $region26: #{tpu_custom_call.1} parent=1 // pred_check
      _
    $region27: #{tpu_custom_call.1} parent=1 // pred_check_branch
      %71 = sbr.rel (0) target = $region29
    $region28: #{tpu_custom_call.1} parent=1 // pred_region
      %73 = dma.done [#allocation6], 4096
    $region29: #{tpu_custom_call.1} parent=1 // pred_fallthru
      _
    // Predicated region
    $region30: #{tpu_custom_call.1} parent=1 // pred_check
      _
    $region31: #{tpu_custom_call.1} parent=1 // pred_check_branch
      %75 = sbr.rel (0) target = $region33
    $region32: #{tpu_custom_call.1} parent=1 // pred_region
      %77 = dma.done [#allocation6], 128
    $region33: #{tpu_custom_call.1} parent=1 // pred_fallthru
      _
    // Predicated region
    $region34: #{tpu_custom_call.1} parent=1 // pred_check
      _
    $region35: #{tpu_custom_call.1} parent=1 // pred_check_branch
      %79 = sbr.rel (0) target = $region37
    $region36: #{tpu_custom_call.1} parent=1 // pred_region
      %81 = dma.done [#allocation9], 4096
    $region37: #{tpu_custom_call.1} parent=1 // pred_fallthru
      _
    %v82 = vld [vmem:[#allocation2] sm:$0xff]
    %v83 = vld [vmem:[#allocation2 + $0x8] sm:$0xff]
    %v84 = vld [vmem:[#allocation2 + $0x10] sm:$0xff]
    %v85 = vld [vmem:[#allocation2 + $0x18] sm:$0xff]
    %v86 = vld [vmem:[#allocation2 + $0x20] sm:$0xff]
    %v87 = vld [vmem:[#allocation2 + $0x28] sm:$0xff]
    %v88 = vld [vmem:[#allocation2 + $0x30] sm:$0xff]
    %v89 = vld [vmem:[#allocation2 + $0x38] sm:$0xff]
    %v90 = vld [vmem:[#allocation2 + $0x40] sm:$0xff]
    %v91 = vld [vmem:[#allocation2 + $0x48] sm:$0xff]
    %v92 = vld [vmem:[#allocation2 + $0x50] sm:$0xff]
    %v93 = vld [vmem:[#allocation2 + $0x58] sm:$0xff]
    %v94 = vld [vmem:[#allocation2 + $0x60] sm:$0xff]
    %v95 = vld [vmem:[#allocation2 + $0x68] sm:$0xff]
    %v96 = vld [vmem:[#allocation2 + $0x70] sm:$0xff]
    %v97 = vld [vmem:[#allocation2 + $0x78] sm:$0xff]
    %v98 = vld [vmem:[#allocation7] ss:$4 sm:$0x3]
    %s99 = scalar_lea.vmem [#allocation7], 1
    %v100 = vld [vmem:[%s99] ss:$4 sm:$0x3]
    %s101 = scalar_lea.vmem [#allocation7], 2
    %v102 = vld [vmem:[%s101] ss:$4 sm:$0x3]
    %v103 = vld [vmem:[#allocation5] sm:$0xff]
    %v104 = vld [vmem:[#allocation5 + $0x8] sm:$0xff]
    %v105 = vld [vmem:[#allocation5 + $0x10] sm:$0xff]
    %v106 = vld [vmem:[#allocation5 + $0x18] sm:$0xff]
    %v107 = vld [vmem:[#allocation5 + $0x20] sm:$0xff]
    %v108 = vld [vmem:[#allocation5 + $0x28] sm:$0xff]
    %v109 = vld [vmem:[#allocation5 + $0x30] sm:$0xff]
    %v110 = vld [vmem:[#allocation5 + $0x38] sm:$0xff]
    %v111 = vld [vmem:[#allocation5 + $0x40] sm:$0xff]
    %v112 = vld [vmem:[#allocation5 + $0x48] sm:$0xff]
    %v113 = vld [vmem:[#allocation5 + $0x50] sm:$0xff]
    %v114 = vld [vmem:[#allocation5 + $0x58] sm:$0xff]
    %v115 = vld [vmem:[#allocation5 + $0x60] sm:$0xff]
    %v116 = vld [vmem:[#allocation5 + $0x68] sm:$0xff]
    %v117 = vld [vmem:[#allocation5 + $0x70] sm:$0xff]
    %v118 = vld [vmem:[#allocation5 + $0x78] sm:$0xff]
    %v119 = vld [vmem:[#allocation5 + $0x80] sm:$0xff]
    %v120 = vld [vmem:[#allocation5 + $0x88] sm:$0xff]
    %v121 = vld [vmem:[#allocation5 + $0x90] sm:$0xff]
    %v122 = vld [vmem:[#allocation5 + $0x98] sm:$0xff]
    %v123 = vld [vmem:[#allocation5 + $0xa0] sm:$0xff]
    %v124 = vld [vmem:[#allocation5 + $0xa8] sm:$0xff]
    %v125 = vld [vmem:[#allocation5 + $0xb0] sm:$0xff]
    %v126 = vld [vmem:[#allocation5 + $0xb8] sm:$0xff]
    %v127 = vld [vmem:[#allocation5 + $0xc0] sm:$0xff]
    %v128 = vld [vmem:[#allocation5 + $0xc8] sm:$0xff]
    %v129 = vld [vmem:[#allocation5 + $0xd0] sm:$0xff]
    %v130 = vld [vmem:[#allocation5 + $0xd8] sm:$0xff]
    %v131 = vld [vmem:[#allocation5 + $0xe0] sm:$0xff]
    %v132 = vld [vmem:[#allocation5 + $0xe8] sm:$0xff]
    %v133 = vld [vmem:[#allocation5 + $0xf0] sm:$0xff]
    %v134 = vld [vmem:[#allocation5 + $0xf8] sm:$0xff]
    %v136 = vperm.slane %v98, 0
    %v137 = vperm.slane %v98, 1
    %140 = vmatpush.msra.mxu0 %v133
    %141 = vmatpush.msra.mxu0 %v131
    %142 = vmatpush.msra.mxu0 %v129
    %143 = vmatpush.msra.mxu0 %v127
    %144 = vmatpush.msra.mxu0 %v125
    %145 = vmatpush.msra.mxu0 %v123
    %146 = vmatpush.msra.mxu0 %v121
    %147 = vmatpush.msra.mxu0 %v119
    %148 = vmatpush.msra.mxu0 %v117
    %149 = vmatpush.msra.mxu0 %v115
    %150 = vmatpush.msra.mxu0 %v113
    %151 = vmatpush.msra.mxu0 %v111
    %152 = vmatpush.msra.mxu0 %v109
    %153 = vmatpush.msra.mxu0 %v107
    %154 = vmatpush.msra.mxu0 %v105
    %155 = vmatpush.msra.mxu0 %v103
    %156 = vmatmul.f32.gmra.mxu0 %v82
    %v157 = vpop.f32.mrf.mxu0
    %v158 = vadd.f32 %v136, %v157
    %159 = vmatmul.f32.gmra.mxu0 %v83
    %v160 = vpop.f32.mrf.mxu0
    %v161 = vadd.f32 %v136, %v160
    %162 = vmatmul.f32.gmra.mxu0 %v84
    %v163 = vpop.f32.mrf.mxu0
    %v164 = vadd.f32 %v136, %v163
    %165 = vmatmul.f32.gmra.mxu0 %v85
    %v166 = vpop.f32.mrf.mxu0
    %v167 = vadd.f32 %v136, %v166
    %168 = vmatmul.f32.gmra.mxu0 %v86
    %v169 = vpop.f32.mrf.mxu0
    %v170 = vadd.f32 %v136, %v169
    %171 = vmatmul.f32.gmra.mxu0 %v87
    %v172 = vpop.f32.mrf.mxu0
    %v173 = vadd.f32 %v136, %v172
    %174 = vmatmul.f32.gmra.mxu0 %v88
    %v175 = vpop.f32.mrf.mxu0
    %v176 = vadd.f32 %v136, %v175
    %177 = vmatmul.f32.gmra.mxu0 %v89
    %v178 = vpop.f32.mrf.mxu0
    %v179 = vadd.f32 %v136, %v178
    %180 = vmatmul.f32.gmra.mxu0 %v90
    %v181 = vpop.f32.mrf.mxu0
    %v182 = vadd.f32 %v136, %v181
    %183 = vmatmul.f32.gmra.mxu0 %v91
    %v184 = vpop.f32.mrf.mxu0
    %v185 = vadd.f32 %v136, %v184
    %186 = vmatmul.f32.gmra.mxu0 %v92
    %v187 = vpop.f32.mrf.mxu0
    %v188 = vadd.f32 %v136, %v187
    %189 = vmatmul.f32.gmra.mxu0 %v93
    %v190 = vpop.f32.mrf.mxu0
    %v191 = vadd.f32 %v136, %v190
    %192 = vmatmul.f32.gmra.mxu0 %v94
    %v193 = vpop.f32.mrf.mxu0
    %v194 = vadd.f32 %v136, %v193
    %195 = vmatmul.f32.gmra.mxu0 %v95
    %v196 = vpop.f32.mrf.mxu0
    %v197 = vadd.f32 %v136, %v196
    %198 = vmatmul.f32.gmra.mxu0 %v96
    %v199 = vpop.f32.mrf.mxu0
    %v200 = vadd.f32 %v136, %v199
    %201 = vmatmul.f32.gmra.mxu0 %v97
    %v202 = vpop.f32.mrf.mxu0
    %v203 = vadd.f32 %v136, %v202
    %204 = vdwg.mxu0
    %205 = vmatpush.msra.mxu0 %v134
    %206 = vmatpush.msra.mxu0 %v132
    %207 = vmatpush.msra.mxu0 %v130
    %208 = vmatpush.msra.mxu0 %v128
    %209 = vmatpush.msra.mxu0 %v126
    %210 = vmatpush.msra.mxu0 %v124
    %211 = vmatpush.msra.mxu0 %v122
    %212 = vmatpush.msra.mxu0 %v120
    %213 = vmatpush.msra.mxu0 %v118
    %214 = vmatpush.msra.mxu0 %v116
    %215 = vmatpush.msra.mxu0 %v114
    %216 = vmatpush.msra.mxu0 %v112
    %217 = vmatpush.msra.mxu0 %v110
    %218 = vmatpush.msra.mxu0 %v108
    %219 = vmatpush.msra.mxu0 %v106
    %220 = vmatpush.msra.mxu0 %v104
    %221 = vmatmul.f32.gmra.mxu0 %v82
    %v222 = vpop.f32.mrf.mxu0
    %v223 = vadd.f32 %v137, %v222
    %224 = vmatmul.f32.gmra.mxu0 %v83
    %v225 = vpop.f32.mrf.mxu0
    %v226 = vadd.f32 %v137, %v225
    %227 = vmatmul.f32.gmra.mxu0 %v84
    %v228 = vpop.f32.mrf.mxu0
    %v229 = vadd.f32 %v137, %v228
    %230 = vmatmul.f32.gmra.mxu0 %v85
    %v231 = vpop.f32.mrf.mxu0
    %v232 = vadd.f32 %v137, %v231
    %233 = vmatmul.f32.gmra.mxu0 %v86
    %v234 = vpop.f32.mrf.mxu0
    %v235 = vadd.f32 %v137, %v234
    %236 = vmatmul.f32.gmra.mxu0 %v87
    %v237 = vpop.f32.mrf.mxu0
    %v238 = vadd.f32 %v137, %v237
    %239 = vmatmul.f32.gmra.mxu0 %v88
    %v240 = vpop.f32.mrf.mxu0
    %v241 = vadd.f32 %v137, %v240
    %242 = vmatmul.f32.gmra.mxu0 %v89
    %v243 = vpop.f32.mrf.mxu0
    %v244 = vadd.f32 %v137, %v243
    %245 = vmatmul.f32.gmra.mxu0 %v90
    %v246 = vpop.f32.mrf.mxu0
    %v247 = vadd.f32 %v137, %v246
    %248 = vmatmul.f32.gmra.mxu0 %v91
    %v249 = vpop.f32.mrf.mxu0
    %v250 = vadd.f32 %v137, %v249
    %251 = vmatmul.f32.gmra.mxu0 %v92
    %v252 = vpop.f32.mrf.mxu0
    %v253 = vadd.f32 %v137, %v252
    %254 = vmatmul.f32.gmra.mxu0 %v93
    %v255 = vpop.f32.mrf.mxu0
    %v256 = vadd.f32 %v137, %v255
    %257 = vmatmul.f32.gmra.mxu0 %v94
    %v258 = vpop.f32.mrf.mxu0
    %v259 = vadd.f32 %v137, %v258
    %260 = vmatmul.f32.gmra.mxu0 %v95
    %v261 = vpop.f32.mrf.mxu0
    %v262 = vadd.f32 %v137, %v261
    %263 = vmatmul.f32.gmra.mxu0 %v96
    %v264 = vpop.f32.mrf.mxu0
    %v265 = vadd.f32 %v137, %v264
    %266 = vmatmul.f32.gmra.mxu0 %v97
    %v267 = vpop.f32.mrf.mxu0
    %v268 = vadd.f32 %v137, %v267
    %269 = vdwg.mxu0
    %v270 = vadd.f32 %v158, %v161
    %v271 = vadd.f32 %v270, %v164
    %v272 = vadd.f32 %v271, %v167
    %v273 = vadd.f32 %v272, %v170
    %v274 = vadd.f32 %v273, %v173
    %v275 = vadd.f32 %v274, %v176
    %v276 = vadd.f32 %v275, %v179
    %v277 = vadd.f32 %v276, %v182
    %v278 = vadd.f32 %v277, %v185
    %v279 = vadd.f32 %v278, %v188
    %v280 = vadd.f32 %v279, %v191
    %v281 = vadd.f32 %v280, %v194
    %v282 = vadd.f32 %v281, %v197
    %v283 = vadd.f32 %v282, %v200
    %v284 = vadd.f32 %v283, %v203
    %v285 = vrot.slane %v284, 4
    %v286 = vadd.f32 %v284, %v285
    %v287 = vrot.slane %v286, 2
    %v288 = vadd.f32 %v286, %v287
    %v289 = vrot.slane %v288, 1
    %v290 = vadd.f32 %v288, %v289
    %v291 = vadd.f32 %v223, %v226
    %v292 = vadd.f32 %v291, %v229
    %v293 = vadd.f32 %v292, %v232
    %v294 = vadd.f32 %v293, %v235
    %v295 = vadd.f32 %v294, %v238
    %v296 = vadd.f32 %v295, %v241
    %v297 = vadd.f32 %v296, %v244
    %v298 = vadd.f32 %v297, %v247
    %v299 = vadd.f32 %v298, %v250
    %v300 = vadd.f32 %v299, %v253
    %v301 = vadd.f32 %v300, %v256
    %v302 = vadd.f32 %v301, %v259
    %v303 = vadd.f32 %v302, %v262
    %v304 = vadd.f32 %v303, %v265
    %v305 = vadd.f32 %v304, %v268
    %v306 = vrot.slane %v305, 4
    %v307 = vadd.f32 %v305, %v306
    %v308 = vrot.slane %v307, 2
    %v309 = vadd.f32 %v307, %v308
    %v310 = vrot.slane %v309, 1
    %v311 = vadd.f32 %v309, %v310
    %v312 = vmul.f32 %v290, 0.0078125
    %v313 = vmul.f32 %v311, 0.0078125
    %v314 = vmul.f32 %v158, %v158
    %v315 = vmul.f32 %v223, %v223
    %v316 = vmul.f32 %v161, %v161
    %v317 = vmul.f32 %v226, %v226
    %v318 = vmul.f32 %v164, %v164
    %v319 = vmul.f32 %v229, %v229
    %v320 = vmul.f32 %v167, %v167
    %v321 = vmul.f32 %v232, %v232
    %v322 = vmul.f32 %v170, %v170
    %v323 = vmul.f32 %v235, %v235
    %v324 = vmul.f32 %v173, %v173
    %v325 = vmul.f32 %v238, %v238
    %v326 = vmul.f32 %v176, %v176
    %v327 = vmul.f32 %v241, %v241
    %v328 = vmul.f32 %v179, %v179
    %v329 = vmul.f32 %v244, %v244
    %v330 = vmul.f32 %v182, %v182
    %v331 = vmul.f32 %v247, %v247
    %v332 = vmul.f32 %v185, %v185
    %v333 = vmul.f32 %v250, %v250
    %v334 = vmul.f32 %v188, %v188
    %v335 = vmul.f32 %v253, %v253
    %v336 = vmul.f32 %v191, %v191
    %v337 = vmul.f32 %v256, %v256
    %v338 = vmul.f32 %v194, %v194
    %v339 = vmul.f32 %v259, %v259
    %v340 = vmul.f32 %v197, %v197
    %v341 = vmul.f32 %v262, %v262
    %v342 = vmul.f32 %v200, %v200
    %v343 = vmul.f32 %v265, %v265
    %v344 = vmul.f32 %v203, %v203
    %v345 = vmul.f32 %v268, %v268
    %v346 = vadd.f32 %v314, %v316
    %v347 = vadd.f32 %v346, %v318
    %v348 = vadd.f32 %v347, %v320
    %v349 = vadd.f32 %v348, %v322
    %v350 = vadd.f32 %v349, %v324
    %v351 = vadd.f32 %v350, %v326
    %v352 = vadd.f32 %v351, %v328
    %v353 = vadd.f32 %v352, %v330
    %v354 = vadd.f32 %v353, %v332
    %v355 = vadd.f32 %v354, %v334
    %v356 = vadd.f32 %v355, %v336
    %v357 = vadd.f32 %v356, %v338
    %v358 = vadd.f32 %v357, %v340
    %v359 = vadd.f32 %v358, %v342
    %v360 = vadd.f32 %v359, %v344
    %v361 = vrot.slane %v360, 4
    %v362 = vadd.f32 %v360, %v361
    %v363 = vrot.slane %v362, 2
    %v364 = vadd.f32 %v362, %v363
    %v365 = vrot.slane %v364, 1
    %v366 = vadd.f32 %v364, %v365
    %v367 = vadd.f32 %v315, %v317
    %v368 = vadd.f32 %v367, %v319
    %v369 = vadd.f32 %v368, %v321
    %v370 = vadd.f32 %v369, %v323
    %v371 = vadd.f32 %v370, %v325
    %v372 = vadd.f32 %v371, %v327
    %v373 = vadd.f32 %v372, %v329
    %v374 = vadd.f32 %v373, %v331
    %v375 = vadd.f32 %v374, %v333
    %v376 = vadd.f32 %v375, %v335
    %v377 = vadd.f32 %v376, %v337
    %v378 = vadd.f32 %v377, %v339
    %v379 = vadd.f32 %v378, %v341
    %v380 = vadd.f32 %v379, %v343
    %v381 = vadd.f32 %v380, %v345
    %v382 = vrot.slane %v381, 4
    %v383 = vadd.f32 %v381, %v382
    %v384 = vrot.slane %v383, 2
    %v385 = vadd.f32 %v383, %v384
    %v386 = vrot.slane %v385, 1
    %v387 = vadd.f32 %v385, %v386
    %v388 = vmul.f32 %v366, 0.0078125
    %v389 = vmul.f32 %v387, 0.0078125
    %v390 = vmul.f32 %v312, %v312
    %v391 = vmul.f32 %v313, %v313
    %v392 = vsub.f32 %v388, %v390
    %v393 = vsub.f32 %v389, %v391
    %v394 = vmax.f32 %v392, 0.0
    %v395 = vmax.f32 %v393, 0.0
    %v396 = vsub.f32 %v158, %v312
    %v397 = vsub.f32 %v223, %v313
    %v398 = vsub.f32 %v161, %v312
    %v399 = vsub.f32 %v226, %v313
    %v400 = vsub.f32 %v164, %v312
    %v401 = vsub.f32 %v229, %v313
    %v402 = vsub.f32 %v167, %v312
    %v403 = vsub.f32 %v232, %v313
    %v404 = vsub.f32 %v170, %v312
    %v405 = vsub.f32 %v235, %v313
    %v406 = vsub.f32 %v173, %v312
    %v407 = vsub.f32 %v238, %v313
    %v408 = vsub.f32 %v176, %v312
    %v409 = vsub.f32 %v241, %v313
    %v410 = vsub.f32 %v179, %v312
    %v411 = vsub.f32 %v244, %v313
    %v412 = vsub.f32 %v182, %v312
    %v413 = vsub.f32 %v247, %v313
    %v414 = vsub.f32 %v185, %v312
    %v415 = vsub.f32 %v250, %v313
    %v416 = vsub.f32 %v188, %v312
    %v417 = vsub.f32 %v253, %v313
    %v418 = vsub.f32 %v191, %v312
    %v419 = vsub.f32 %v256, %v313
    %v420 = vsub.f32 %v194, %v312
    %v421 = vsub.f32 %v259, %v313
    %v422 = vsub.f32 %v197, %v312
    %v423 = vsub.f32 %v262, %v313
    %v424 = vsub.f32 %v200, %v312
    %v425 = vsub.f32 %v265, %v313
    %v426 = vsub.f32 %v203, %v312
    %v427 = vsub.f32 %v268, %v313
    %v428 = vadd.f32 %v394, 1e-05
    %v429 = vadd.f32 %v395, 1e-05
    %v430 = vrsqrt.pop %v428
    %v431 = vmul.f32 %v430, %v428
    %v432 = vmul.f32 %v431, %v430
    %v433 = vmul.f32 0.5, %v432
    %v434 = vsub.f32 1.5, %v433
    %v435 = vmul.f32 %v430, %v434
    %vm436 = vweird.f32 %v428
    %vm437 = vweird.f32 %v430
    %vm438 = vmor %vm436, %vm437
    %v439 = vsel %vm438, %v430, %v435
    %v440 = vrsqrt.pop %v429
    %v441 = vmul.f32 %v440, %v429
    %v442 = vmul.f32 %v441, %v440
    %v443 = vmul.f32 0.5, %v442
    %v444 = vsub.f32 1.5, %v443
    %v445 = vmul.f32 %v440, %v444
    %vm446 = vweird.f32 %v429
    %vm447 = vweird.f32 %v440
    %vm448 = vmor %vm446, %vm447
    %v449 = vsel %vm448, %v440, %v445
    %v450 = vmul.f32 %v396, %v439
    %v451 = vmul.f32 %v397, %v449
    %v452 = vmul.f32 %v398, %v439
    %v453 = vmul.f32 %v399, %v449
    %v454 = vmul.f32 %v400, %v439
    %v455 = vmul.f32 %v401, %v449
    %v456 = vmul.f32 %v402, %v439
    %v457 = vmul.f32 %v403, %v449
    %v458 = vmul.f32 %v404, %v439
    %v459 = vmul.f32 %v405, %v449
    %v460 = vmul.f32 %v406, %v439
    %v461 = vmul.f32 %v407, %v449
    %v462 = vmul.f32 %v408, %v439
    %v463 = vmul.f32 %v409, %v449
    %v464 = vmul.f32 %v410, %v439
    %v465 = vmul.f32 %v411, %v449
    %v466 = vmul.f32 %v412, %v439
    %v467 = vmul.f32 %v413, %v449
    %v468 = vmul.f32 %v414, %v439
    %v469 = vmul.f32 %v415, %v449
    %v470 = vmul.f32 %v416, %v439
    %v471 = vmul.f32 %v417, %v449
    %v472 = vmul.f32 %v418, %v439
    %v473 = vmul.f32 %v419, %v449
    %v474 = vmul.f32 %v420, %v439
    %v475 = vmul.f32 %v421, %v449
    %v476 = vmul.f32 %v422, %v439
    %v477 = vmul.f32 %v423, %v449
    %v478 = vmul.f32 %v424, %v439
    %v479 = vmul.f32 %v425, %v449
    %v480 = vmul.f32 %v426, %v439
    %v481 = vmul.f32 %v427, %v449
    %v483 = vperm.slane %v100, 0
    %v484 = vperm.slane %v100, 1
    %v487 = vmul.f32 %v450, %v483
    %v488 = vmul.f32 %v451, %v484
    %v489 = vmul.f32 %v452, %v483
    %v490 = vmul.f32 %v453, %v484
    %v491 = vmul.f32 %v454, %v483
    %v492 = vmul.f32 %v455, %v484
    %v493 = vmul.f32 %v456, %v483
    %v494 = vmul.f32 %v457, %v484
    %v495 = vmul.f32 %v458, %v483
    %v496 = vmul.f32 %v459, %v484
    %v497 = vmul.f32 %v460, %v483
    %v498 = vmul.f32 %v461, %v484
    %v499 = vmul.f32 %v462, %v483
    %v500 = vmul.f32 %v463, %v484
    %v501 = vmul.f32 %v464, %v483
    %v502 = vmul.f32 %v465, %v484
    %v503 = vmul.f32 %v466, %v483
    %v504 = vmul.f32 %v467, %v484
    %v505 = vmul.f32 %v468, %v483
    %v506 = vmul.f32 %v469, %v484
    %v507 = vmul.f32 %v470, %v483
    %v508 = vmul.f32 %v471, %v484
    %v509 = vmul.f32 %v472, %v483
    %v510 = vmul.f32 %v473, %v484
    %v511 = vmul.f32 %v474, %v483
    %v512 = vmul.f32 %v475, %v484
    %v513 = vmul.f32 %v476, %v483
    %v514 = vmul.f32 %v477, %v484
    %v515 = vmul.f32 %v478, %v483
    %v516 = vmul.f32 %v479, %v484
    %v517 = vmul.f32 %v480, %v483
    %v518 = vmul.f32 %v481, %v484
    %v520 = vperm.slane %v102, 0
    %v521 = vperm.slane %v102, 1
    %v524 = vadd.f32 %v487, %v520
    %v525 = vadd.f32 %v488, %v521
    %v526 = vadd.f32 %v489, %v520
    %v527 = vadd.f32 %v490, %v521
    %v528 = vadd.f32 %v491, %v520
    %v529 = vadd.f32 %v492, %v521
    %v530 = vadd.f32 %v493, %v520
    %v531 = vadd.f32 %v494, %v521
    %v532 = vadd.f32 %v495, %v520
    %v533 = vadd.f32 %v496, %v521
    %v534 = vadd.f32 %v497, %v520
    %v535 = vadd.f32 %v498, %v521
    %v536 = vadd.f32 %v499, %v520
    %v537 = vadd.f32 %v500, %v521
    %v538 = vadd.f32 %v501, %v520
    %v539 = vadd.f32 %v502, %v521
    %v540 = vadd.f32 %v503, %v520
    %v541 = vadd.f32 %v504, %v521
    %v542 = vadd.f32 %v505, %v520
    %v543 = vadd.f32 %v506, %v521
    %v544 = vadd.f32 %v507, %v520
    %v545 = vadd.f32 %v508, %v521
    %v546 = vadd.f32 %v509, %v520
    %v547 = vadd.f32 %v510, %v521
    %v548 = vadd.f32 %v511, %v520
    %v549 = vadd.f32 %v512, %v521
    %v550 = vadd.f32 %v513, %v520
    %v551 = vadd.f32 %v514, %v521
    %v552 = vadd.f32 %v515, %v520
    %v553 = vadd.f32 %v516, %v521
    %v554 = vadd.f32 %v517, %v520
    %v555 = vadd.f32 %v518, %v521
    %v556 = vmax.f32 %v524, 0.0
    %v557 = vmax.f32 %v525, 0.0
    %v558 = vmax.f32 %v526, 0.0
    %v559 = vmax.f32 %v527, 0.0
    %v560 = vmax.f32 %v528, 0.0
    %v561 = vmax.f32 %v529, 0.0
    %v562 = vmax.f32 %v530, 0.0
    %v563 = vmax.f32 %v531, 0.0
    %v564 = vmax.f32 %v532, 0.0
    %v565 = vmax.f32 %v533, 0.0
    %v566 = vmax.f32 %v534, 0.0
    %v567 = vmax.f32 %v535, 0.0
    %v568 = vmax.f32 %v536, 0.0
    %v569 = vmax.f32 %v537, 0.0
    %v570 = vmax.f32 %v538, 0.0
    %v571 = vmax.f32 %v539, 0.0
    %v572 = vmax.f32 %v540, 0.0
    %v573 = vmax.f32 %v541, 0.0
    %v574 = vmax.f32 %v542, 0.0
    %v575 = vmax.f32 %v543, 0.0
    %v576 = vmax.f32 %v544, 0.0
    %v577 = vmax.f32 %v545, 0.0
    %v578 = vmax.f32 %v546, 0.0
    %v579 = vmax.f32 %v547, 0.0
    %v580 = vmax.f32 %v548, 0.0
    %v581 = vmax.f32 %v549, 0.0
    %v582 = vmax.f32 %v550, 0.0
    %v583 = vmax.f32 %v551, 0.0
    %v584 = vmax.f32 %v552, 0.0
    %v585 = vmax.f32 %v553, 0.0
    %v586 = vmax.f32 %v554, 0.0
    %v587 = vmax.f32 %v555, 0.0
    %v588 = vld [vmem:[#allocation8] sm:$0xff]
    %v589 = vld [vmem:[#allocation8 + $0x8] sm:$0xff]
    %v590 = vld [vmem:[#allocation8 + $0x10] sm:$0xff]
    %v591 = vld [vmem:[#allocation8 + $0x18] sm:$0xff]
    %v592 = vld [vmem:[#allocation8 + $0x20] sm:$0xff]
    %v593 = vld [vmem:[#allocation8 + $0x28] sm:$0xff]
    %v594 = vld [vmem:[#allocation8 + $0x30] sm:$0xff]
    %v595 = vld [vmem:[#allocation8 + $0x38] sm:$0xff]
    %v596 = vld [vmem:[#allocation8 + $0x40] sm:$0xff]
    %v597 = vld [vmem:[#allocation8 + $0x48] sm:$0xff]
    %v598 = vld [vmem:[#allocation8 + $0x50] sm:$0xff]
    %v599 = vld [vmem:[#allocation8 + $0x58] sm:$0xff]
    %v600 = vld [vmem:[#allocation8 + $0x60] sm:$0xff]
    %v601 = vld [vmem:[#allocation8 + $0x68] sm:$0xff]
    %v602 = vld [vmem:[#allocation8 + $0x70] sm:$0xff]
    %v603 = vld [vmem:[#allocation8 + $0x78] sm:$0xff]
    %v604 = vld [vmem:[#allocation8 + $0x80] sm:$0xff]
    %v605 = vld [vmem:[#allocation8 + $0x88] sm:$0xff]
    %v606 = vld [vmem:[#allocation8 + $0x90] sm:$0xff]
    %v607 = vld [vmem:[#allocation8 + $0x98] sm:$0xff]
    %v608 = vld [vmem:[#allocation8 + $0xa0] sm:$0xff]
    %v609 = vld [vmem:[#allocation8 + $0xa8] sm:$0xff]
    %v610 = vld [vmem:[#allocation8 + $0xb0] sm:$0xff]
    %v611 = vld [vmem:[#allocation8 + $0xb8] sm:$0xff]
    %v612 = vld [vmem:[#allocation8 + $0xc0] sm:$0xff]
    %v613 = vld [vmem:[#allocation8 + $0xc8] sm:$0xff]
    %v614 = vld [vmem:[#allocation8 + $0xd0] sm:$0xff]
    %v615 = vld [vmem:[#allocation8 + $0xd8] sm:$0xff]
    %v616 = vld [vmem:[#allocation8 + $0xe0] sm:$0xff]
    %v617 = vld [vmem:[#allocation8 + $0xe8] sm:$0xff]
    %v618 = vld [vmem:[#allocation8 + $0xf0] sm:$0xff]
    %v619 = vld [vmem:[#allocation8 + $0xf8] sm:$0xff]
    %v620 = vld [vmem:[%s4] sm:$0x1]
    %v622 = vperm.slane %v620, 0
    %624 = vmatpush.msra.mxu0 %v603
    %625 = vmatpush.msra.mxu0 %v602
    %626 = vmatpush.msra.mxu0 %v601
    %627 = vmatpush.msra.mxu0 %v600
    %628 = vmatpush.msra.mxu0 %v599
    %629 = vmatpush.msra.mxu0 %v598
    %630 = vmatpush.msra.mxu0 %v597
    %631 = vmatpush.msra.mxu0 %v596
    %632 = vmatpush.msra.mxu0 %v595
    %633 = vmatpush.msra.mxu0 %v594
    %634 = vmatpush.msra.mxu0 %v593
    %635 = vmatpush.msra.mxu0 %v592
    %636 = vmatpush.msra.mxu0 %v591
    %637 = vmatpush.msra.mxu0 %v590
    %638 = vmatpush.msra.mxu0 %v589
    %639 = vmatpush.msra.mxu0 %v588
    %640 = vmatmul.f32.gmra.mxu0 %v556
    %v641 = vpop.f32.mrf.mxu0
    %v642 = vadd.f32 %v622, %v641
    %643 = vmatmul.f32.gmra.mxu0 %v558
    %v644 = vpop.f32.mrf.mxu0
    %v645 = vadd.f32 %v622, %v644
    %646 = vmatmul.f32.gmra.mxu0 %v560
    %v647 = vpop.f32.mrf.mxu0
    %v648 = vadd.f32 %v622, %v647
    %649 = vmatmul.f32.gmra.mxu0 %v562
    %v650 = vpop.f32.mrf.mxu0
    %v651 = vadd.f32 %v622, %v650
    %652 = vmatmul.f32.gmra.mxu0 %v564
    %v653 = vpop.f32.mrf.mxu0
    %v654 = vadd.f32 %v622, %v653
    %655 = vmatmul.f32.gmra.mxu0 %v566
    %v656 = vpop.f32.mrf.mxu0
    %v657 = vadd.f32 %v622, %v656
    %658 = vmatmul.f32.gmra.mxu0 %v568
    %v659 = vpop.f32.mrf.mxu0
    %v660 = vadd.f32 %v622, %v659
    %661 = vmatmul.f32.gmra.mxu0 %v570
    %v662 = vpop.f32.mrf.mxu0
    %v663 = vadd.f32 %v622, %v662
    %664 = vmatmul.f32.gmra.mxu0 %v572
    %v665 = vpop.f32.mrf.mxu0
    %v666 = vadd.f32 %v622, %v665
    %667 = vmatmul.f32.gmra.mxu0 %v574
    %v668 = vpop.f32.mrf.mxu0
    %v669 = vadd.f32 %v622, %v668
    %670 = vmatmul.f32.gmra.mxu0 %v576
    %v671 = vpop.f32.mrf.mxu0
    %v672 = vadd.f32 %v622, %v671
    %673 = vmatmul.f32.gmra.mxu0 %v578
    %v674 = vpop.f32.mrf.mxu0
    %v675 = vadd.f32 %v622, %v674
    %676 = vmatmul.f32.gmra.mxu0 %v580
    %v677 = vpop.f32.mrf.mxu0
    %v678 = vadd.f32 %v622, %v677
    %679 = vmatmul.f32.gmra.mxu0 %v582
    %v680 = vpop.f32.mrf.mxu0
    %v681 = vadd.f32 %v622, %v680
    %682 = vmatmul.f32.gmra.mxu0 %v584
    %v683 = vpop.f32.mrf.mxu0
    %v684 = vadd.f32 %v622, %v683
    %685 = vmatmul.f32.gmra.mxu0 %v586
    %v686 = vpop.f32.mrf.mxu0
    %v687 = vadd.f32 %v622, %v686
    %688 = vdwg.mxu0
    %689 = vmatpush.msra.mxu0 %v619
    %690 = vmatpush.msra.mxu0 %v618
    %691 = vmatpush.msra.mxu0 %v617
    %692 = vmatpush.msra.mxu0 %v616
    %693 = vmatpush.msra.mxu0 %v615
    %694 = vmatpush.msra.mxu0 %v614
    %695 = vmatpush.msra.mxu0 %v613
    %696 = vmatpush.msra.mxu0 %v612
    %697 = vmatpush.msra.mxu0 %v611
    %698 = vmatpush.msra.mxu0 %v610
    %699 = vmatpush.msra.mxu0 %v609
    %700 = vmatpush.msra.mxu0 %v608
    %701 = vmatpush.msra.mxu0 %v607
    %702 = vmatpush.msra.mxu0 %v606
    %703 = vmatpush.msra.mxu0 %v605
    %704 = vmatpush.msra.mxu0 %v604
    %705 = vmatmul.f32.gmra.mxu0 %v557
    %v706 = vpop.f32.mrf.mxu0
    %v707 = vadd.f32 %v642, %v706
    %708 = vmatmul.f32.gmra.mxu0 %v559
    %v709 = vpop.f32.mrf.mxu0
    %v710 = vadd.f32 %v645, %v709
    %711 = vmatmul.f32.gmra.mxu0 %v561
    %v712 = vpop.f32.mrf.mxu0
    %v713 = vadd.f32 %v648, %v712
    %714 = vmatmul.f32.gmra.mxu0 %v563
    %v715 = vpop.f32.mrf.mxu0
    %v716 = vadd.f32 %v651, %v715
    %717 = vmatmul.f32.gmra.mxu0 %v565
    %v718 = vpop.f32.mrf.mxu0
    %v719 = vadd.f32 %v654, %v718
    %720 = vmatmul.f32.gmra.mxu0 %v567
    %v721 = vpop.f32.mrf.mxu0
    %v722 = vadd.f32 %v657, %v721
    %723 = vmatmul.f32.gmra.mxu0 %v569
    %v724 = vpop.f32.mrf.mxu0
    %v725 = vadd.f32 %v660, %v724
    %726 = vmatmul.f32.gmra.mxu0 %v571
    %v727 = vpop.f32.mrf.mxu0
    %v728 = vadd.f32 %v663, %v727
    %729 = vmatmul.f32.gmra.mxu0 %v573
    %v730 = vpop.f32.mrf.mxu0
    %v731 = vadd.f32 %v666, %v730
    %732 = vmatmul.f32.gmra.mxu0 %v575
    %v733 = vpop.f32.mrf.mxu0
    %v734 = vadd.f32 %v669, %v733
    %735 = vmatmul.f32.gmra.mxu0 %v577
    %v736 = vpop.f32.mrf.mxu0
    %v737 = vadd.f32 %v672, %v736
    %738 = vmatmul.f32.gmra.mxu0 %v579
    %v739 = vpop.f32.mrf.mxu0
    %v740 = vadd.f32 %v675, %v739
    %741 = vmatmul.f32.gmra.mxu0 %v581
    %v742 = vpop.f32.mrf.mxu0
    %v743 = vadd.f32 %v678, %v742
    %744 = vmatmul.f32.gmra.mxu0 %v583
    %v745 = vpop.f32.mrf.mxu0
    %v746 = vadd.f32 %v681, %v745
    %747 = vmatmul.f32.gmra.mxu0 %v585
    %v748 = vpop.f32.mrf.mxu0
    %v749 = vadd.f32 %v684, %v748
    %750 = vmatmul.f32.gmra.mxu0 %v587
    %v751 = vpop.f32.mrf.mxu0
    %v752 = vadd.f32 %v687, %v751
    %753 = vdwg.mxu0
    %v754 = vadd.f32 %v707, %v710
    %v755 = vadd.f32 %v754, %v713
    %v756 = vadd.f32 %v755, %v716
    %v757 = vadd.f32 %v756, %v719
    %v758 = vadd.f32 %v757, %v722
    %v759 = vadd.f32 %v758, %v725
    %v760 = vadd.f32 %v759, %v728
    %v761 = vadd.f32 %v760, %v731
    %v762 = vadd.f32 %v761, %v734
    %v763 = vadd.f32 %v762, %v737
    %v764 = vadd.f32 %v763, %v740
    %v765 = vadd.f32 %v764, %v743
    %v766 = vadd.f32 %v765, %v746
    %v767 = vadd.f32 %v766, %v749
    %v768 = vadd.f32 %v767, %v752
    %v769 = vrot.slane %v768, 4
    %v770 = vadd.f32 %v768, %v769
    %v771 = vrot.slane %v770, 2
    %v772 = vadd.f32 %v770, %v771
    %v773 = vrot.slane %v772, 1
    %v774 = vadd.f32 %v772, %v773
    %v775 = vmul.f32 %v774, 0.0078125
    %v776 = vmul.f32 %v707, %v707
    %v777 = vmul.f32 %v710, %v710
    %v778 = vmul.f32 %v713, %v713
    %v779 = vmul.f32 %v716, %v716
    %v780 = vmul.f32 %v719, %v719
    %v781 = vmul.f32 %v722, %v722
    %v782 = vmul.f32 %v725, %v725
    %v783 = vmul.f32 %v728, %v728
    %v784 = vmul.f32 %v731, %v731
    %v785 = vmul.f32 %v734, %v734
    %v786 = vmul.f32 %v737, %v737
    %v787 = vmul.f32 %v740, %v740
    %v788 = vmul.f32 %v743, %v743
    %v789 = vmul.f32 %v746, %v746
    %v790 = vmul.f32 %v749, %v749
    %v791 = vmul.f32 %v752, %v752
    %v792 = vadd.f32 %v776, %v777
    %v793 = vadd.f32 %v792, %v778
    %v794 = vadd.f32 %v793, %v779
    %v795 = vadd.f32 %v794, %v780
    %v796 = vadd.f32 %v795, %v781
    %v797 = vadd.f32 %v796, %v782
    %v798 = vadd.f32 %v797, %v783
    %v799 = vadd.f32 %v798, %v784
    %v800 = vadd.f32 %v799, %v785
    %v801 = vadd.f32 %v800, %v786
    %v802 = vadd.f32 %v801, %v787
    %v803 = vadd.f32 %v802, %v788
    %v804 = vadd.f32 %v803, %v789
    %v805 = vadd.f32 %v804, %v790
    %v806 = vadd.f32 %v805, %v791
    %v807 = vrot.slane %v806, 4
    %v808 = vadd.f32 %v806, %v807
    %v809 = vrot.slane %v808, 2
    %v810 = vadd.f32 %v808, %v809
    %v811 = vrot.slane %v810, 1
    %v812 = vadd.f32 %v810, %v811
    %v813 = vmul.f32 %v812, 0.0078125
    %v814 = vmul.f32 %v775, %v775
    %v815 = vsub.f32 %v813, %v814
    %v816 = vmax.f32 %v815, 0.0
    %v817 = vsub.f32 %v707, %v775
    %v818 = vsub.f32 %v710, %v775
    %v819 = vsub.f32 %v713, %v775
    %v820 = vsub.f32 %v716, %v775
    %v821 = vsub.f32 %v719, %v775
    %v822 = vsub.f32 %v722, %v775
    %v823 = vsub.f32 %v725, %v775
    %v824 = vsub.f32 %v728, %v775
    %v825 = vsub.f32 %v731, %v775
    %v826 = vsub.f32 %v734, %v775
    %v827 = vsub.f32 %v737, %v775
    %v828 = vsub.f32 %v740, %v775
    %v829 = vsub.f32 %v743, %v775
    %v830 = vsub.f32 %v746, %v775
    %v831 = vsub.f32 %v749, %v775
    %v832 = vsub.f32 %v752, %v775
    %v833 = vadd.f32 %v816, 1e-05
    %v834 = vrsqrt.pop %v833
    %v835 = vmul.f32 %v834, %v833
    %v836 = vmul.f32 %v835, %v834
    %v837 = vmul.f32 0.5, %v836
    %v838 = vsub.f32 1.5, %v837
    %v839 = vmul.f32 %v834, %v838
    %vm840 = vweird.f32 %v833
    %vm841 = vweird.f32 %v834
    %vm842 = vmor %vm840, %vm841
    %v843 = vsel %vm842, %v834, %v839
    %v844 = vmul.f32 %v817, %v843
    %v845 = vmul.f32 %v818, %v843
    %v846 = vmul.f32 %v819, %v843
    %v847 = vmul.f32 %v820, %v843
    %v848 = vmul.f32 %v821, %v843
    %v849 = vmul.f32 %v822, %v843
    %v850 = vmul.f32 %v823, %v843
    %v851 = vmul.f32 %v824, %v843
    %v852 = vmul.f32 %v825, %v843
    %v853 = vmul.f32 %v826, %v843
    %v854 = vmul.f32 %v827, %v843
    %v855 = vmul.f32 %v828, %v843
    %v856 = vmul.f32 %v829, %v843
    %v857 = vmul.f32 %v830, %v843
    %v858 = vmul.f32 %v831, %v843
    %v859 = vmul.f32 %v832, %v843
    %860 = vst [vmem:[#allocation10] sm:$0xff] %v844
    %861 = vst [vmem:[#allocation10 + $0x8] sm:$0xff] %v845
    %862 = vst [vmem:[#allocation10 + $0x10] sm:$0xff] %v846
    %863 = vst [vmem:[#allocation10 + $0x18] sm:$0xff] %v847
    %864 = vst [vmem:[#allocation10 + $0x20] sm:$0xff] %v848
    %865 = vst [vmem:[#allocation10 + $0x28] sm:$0xff] %v849
    %866 = vst [vmem:[#allocation10 + $0x30] sm:$0xff] %v850
    %867 = vst [vmem:[#allocation10 + $0x38] sm:$0xff] %v851
    %868 = vst [vmem:[#allocation10 + $0x40] sm:$0xff] %v852
    %869 = vst [vmem:[#allocation10 + $0x48] sm:$0xff] %v853
    %870 = vst [vmem:[#allocation10 + $0x50] sm:$0xff] %v854
    %871 = vst [vmem:[#allocation10 + $0x58] sm:$0xff] %v855
    %872 = vst [vmem:[#allocation10 + $0x60] sm:$0xff] %v856
    %873 = vst [vmem:[#allocation10 + $0x68] sm:$0xff] %v857
    %874 = vst [vmem:[#allocation10 + $0x70] sm:$0xff] %v858
    %875 = vst [vmem:[#allocation10 + $0x78] sm:$0xff] %v859
    // Predicated region
    $region38: #{tpu_custom_call.1} parent=1 // pred_check
      _
    $region39: #{tpu_custom_call.1} parent=1 // pred_check_branch
      %877 = sbr.rel (0) target = $region41
    $region40: #{tpu_custom_call.1} parent=1 // pred_region
      %879 = vsyncadd [#allocation4], 0
      %s880 = sshll.u32 [#allocation10], 4
      %s881 = int_to_ptr.vmem [resolvable:$true] %s880
      %s882 = sshll.u32 %s5, 4
      %s883 = int_to_ptr.hbm [resolvable:$true] %s882
      %888 = dma.vmem_to_hbm [thread:$0]  %s881, 2048, %s883, [#allocation4], 128, 128, 8
    $region41: #{tpu_custom_call.1} parent=1 // pred_fallthru
      _
    // Predicated region
    $region42: #{tpu_custom_call.1} parent=1 // pred_check
      _
    $region43: #{tpu_custom_call.1} parent=1 // pred_check_branch
      %890 = sbr.rel (0) target = $region45
    $region44: #{tpu_custom_call.1} parent=1 // pred_region
      %892 = dma.done [#allocation4], 2048
    $region45: #{tpu_custom_call.1} parent=1 // pred_fallthru
      _
    %893 = vsyncpa [#allocation3], 1
    %894 = vsyncpa [#allocation6], 1
    %895 = vsyncpa [#allocation9], 1
    %896 = vsyncpa [#allocation4], 1

</llo_original>
